<compile_context>
chip_gen: v7x
topology: tpu7x:2x2x1
jax: 0.10.0
libtpu: 0.0.40
codegen_flags: <defaults>
</compile_context>

<pallas_src>
import functools

import jax
import jax.numpy as jnp
from jax.experimental import pallas as pl
from jax.experimental.pallas import tpu as pltpu


# ---------------------------------------------------------------------------
# Fused kernel: im2col conv (3 branches merged) + BN(train) + ReLU + strided
# 1x1 mixing conv.
# ---------------------------------------------------------------------------
def _fused_kernel(patch_ref, wcat_ref, bcat_ref, gamma_ref, beta_ref,
                  w4_ref, b4_ref, o_ref, y_ref, sum_ref, sq_ref,
                  *, m_total, mt, n_keep, eps):
    t = pl.program_id(0)

    @pl.when(t == 0)
    def _init():
        sum_ref[...] = jnp.zeros_like(sum_ref)
        sq_ref[...] = jnp.zeros_like(sq_ref)

    # --- fused 3-branch conv: one bf16 im2col matmul, f32 accumulation -------
    y_t = jnp.dot(patch_ref[...], wcat_ref[...],
                  preferred_element_type=jnp.float32) + bcat_ref[...]

    # --- single-pass BatchNorm statistics (per channel, over batch+space) ----
    sum_ref[...] += jnp.sum(y_t, axis=0, keepdims=True)
    sq_ref[...] += jnp.sum(y_t * y_t, axis=0, keepdims=True)

    # --- keep conv outputs of the stride-selected pixels (prefix rows of M) --
    @pl.when(t < n_keep)
    def _save():
        row0 = pl.multiple_of(t * mt, mt)
        y_ref[pl.ds(row0, mt), :] = y_t

    # --- finalize: BN affine + ReLU + fused stride-2 1x1 mixing conv ---------
    @pl.when(t == pl.num_programs(0) - 1)
    def _finalize():
        cnt = float(m_total)
        mean = sum_ref[...] / cnt
        var = sq_ref[...] / cnt - mean * mean       # biased var (BN training)
        scale = gamma_ref[...] * jax.lax.rsqrt(var + eps)
        shift = beta_ref[...] - mean * scale
        yk = jnp.maximum(y_ref[...] * scale + shift, 0.0)        # (P, c_cat)
        o = jnp.dot(yk.astype(jnp.bfloat16), w4_ref[...],
                    preferred_element_type=jnp.float32) + b4_ref[...]
        o_ref[...] = o


# ---------------------------------------------------------------------------
# Wrapper glue (pure XLA): im2col with prefix ordering, merged weights, specs.
# ---------------------------------------------------------------------------
def _round_up(x, m):
    return (x + m - 1) // m * m


def _im2col_prefix_ordered(x_nchw, kmax, stride):
    """im2col patches; rows ordered so the stride-selected pixels come first.

    Row ordering: (h%stride, w%stride, n, h//stride, w//stride); the first
    N*Ho*Wo rows are exactly the pixels sampled by the stride-2 1x1 conv,
    ordered (n, ho, wo).  Column ordering: (ky, kx, cin).
    """
    N, Cin, H, W = x_nchw.shape
    s = stride
    assert H % s == 0 and W % s == 0, "stride must divide spatial dims"
    # TODO(synk): handle H/W not divisible by stride (PyTorch allows it).
    p = kmax // 2
    xp = jnp.pad(x_nchw, ((0, 0), (0, 0), (p, p), (p, p)))
    cols = [xp[:, :, ky:ky + H, kx:kx + W]              # (N, Cin, H, W)
            for ky in range(kmax) for kx in range(kmax)]
    pat = jnp.stack(cols, axis=0)                        # (kk, N, Cin, H, W)
    pat = jnp.transpose(pat, (1, 3, 4, 0, 2))            # (N, H, W, kk, Cin)
    K = kmax * kmax * Cin
    Ho, Wo = H // s, W // s
    pat = pat.reshape(N, H, W, K)
    pat = pat.reshape(N, Ho, s, Wo, s, K)
    pat = jnp.transpose(pat, (2, 4, 0, 1, 3, 5))         # (s, s, N, Ho, Wo, K)
    return pat.reshape(N * H * W, K), (Ho, Wo)


def _merge_branch_weights(ws, bs, kmax):
    """Center & zero-pad each branch's HWIO weight into one (kmax, kmax) kernel."""
    Cin = ws[0].shape[2]
    c_cat = sum(w.shape[3] for w in ws)
    wm = jnp.zeros((kmax, kmax, Cin, c_cat), jnp.float32)
    off = 0
    for w in ws:
        k, cout = w.shape[0], w.shape[3]
        pad = (kmax - k) // 2
        wm = wm.at[pad:pad + k, pad:pad + k, :, off:off + cout].set(
            w.astype(jnp.float32))
        off += cout
    bcat = jnp.concatenate([b.astype(jnp.float32) for b in bs])
    return wm.reshape(kmax * kmax * Cin, c_cat), bcat


def multi_filter_layer(x_nchw, params, *, filter_sizes=(3, 5, 7), stride=2,
                       eps=1e-5, mt_target=512):
    N, Cin, H, W = x_nchw.shape
    kmax = max(filter_sizes)

    patches, (Ho, Wo) = _im2col_prefix_ordered(
        x_nchw.astype(jnp.float32), kmax, stride)
    wcat, bcat = _merge_branch_weights(
        [params["w1"], params["w2"], params["w3"]],
        [params["b1"], params["b2"], params["b3"]], kmax)

    M, K = patches.shape
    c_cat = wcat.shape[1]
    c_out = params["w4"].shape[1]
    P = N * Ho * Wo                     # stride-selected pixels (prefix rows)

    # Lane-align the contraction dim (K=7*7*Cin -> multiple of 128, MXU-friendly)
    Kpad = _round_up(K, 128)
    patches = jnp.pad(patches, ((0, 0), (0, Kpad - K))).astype(jnp.bfloat16)
    wcat = jnp.pad(wcat, ((0, Kpad - K), (0, 0))).astype(jnp.bfloat16)

    # M tile: largest multiple of 8 that divides P (hence divides M = P*stride^2)
    assert P % 8 == 0 and M % 8 == 0, "pad batch/spatial dims to multiples of 8"
    mt = 8
    for cand in range(8, min(P, mt_target) + 1, 8):
        if P % cand == 0:
            mt = cand
    n_keep = P // mt

    kernel = functools.partial(_fused_kernel, m_total=M, mt=mt,
                               n_keep=n_keep, eps=eps)

    out = pl.pallas_call(
        kernel,
        out_shape=jax.ShapeDtypeStruct((P, c_out), jnp.float32),
        grid=(M // mt,),
        in_specs=[
            pl.BlockSpec((mt, Kpad), lambda t: (t, 0)),      # streamed patches
            pl.BlockSpec((Kpad, c_cat), lambda t: (0, 0)),   # merged conv weight
            pl.BlockSpec((1, c_cat), lambda t: (0, 0)),      # merged conv bias
            pl.BlockSpec((1, c_cat), lambda t: (0, 0)),      # gamma
            pl.BlockSpec((1, c_cat), lambda t: (0, 0)),      # beta
            pl.BlockSpec((c_cat, c_out), lambda t: (0, 0)),  # 1x1 mixing weight
            pl.BlockSpec((1, c_out), lambda t: (0, 0)),      # 1x1 mixing bias
        ],
        out_specs=pl.BlockSpec((P, c_out), lambda t: (0, 0)),
        scratch_shapes=[
            pltpu.VMEM((P, c_cat), jnp.float32),   # conv out of selected pixels
            pltpu.VMEM((1, c_cat), jnp.float32),   # per-channel sum
            pltpu.VMEM((1, c_cat), jnp.float32),   # per-channel sum of squares
        ],
        compiler_params=pltpu.CompilerParams(
            dimension_semantics=("arbitrary",),    # BN stats carried across tiles
            vmem_limit_bytes=32 * 1024 * 1024),
    )(patches, wcat,
      bcat.reshape(1, c_cat),
      params["gamma"].reshape(1, c_cat).astype(jnp.float32),
      params["beta"].reshape(1, c_cat).astype(jnp.float32),
      params["w4"].astype(jnp.bfloat16),
      params["b4"].reshape(1, c_out).astype(jnp.float32))

    # Prefix rows are ordered (n, ho, wo) -> back to NCHW like the PyTorch module
    return jnp.transpose(out.reshape(N, Ho, Wo, c_out), (0, 3, 1, 2))


# ---------------------------------------------------------------------------
# Pure-JAX reference (for self-check only)
# ---------------------------------------------------------------------------
def reference_forward(x, params, *, stride=2, eps=1e-5):
    def conv_same(x, w, b):
        p = w.shape[0] // 2
        y = jax.lax.conv_general_dilated(
            x, w, window_strides=(1, 1), padding=((p, p), (p, p)),
            dimension_numbers=("NCHW", "HWIO", "NCHW"))
        return y + b.reshape(1, -1, 1, 1)

    y = jnp.concatenate([conv_same(x, params["w1"], params["b1"]),
                         conv_same(x, params["w2"], params["b2"]),
                         conv_same(x, params["w3"], params["b3"])], axis=1)
    mean = jnp.mean(y, axis=(0, 2, 3), keepdims=True)
    var = jnp.var(y, axis=(0, 2, 3), keepdims=True)
    y = (y - mean) / jnp.sqrt(var + eps)
    y = y * params["gamma"].reshape(1, -1, 1, 1) + params["beta"].reshape(1, -1, 1, 1)
    y = jnp.maximum(y, 0.0)
    w4 = params["w4"].reshape(1, 1, *params["w4"].shape)
    out = jax.lax.conv_general_dilated(
        y, w4, window_strides=(stride, stride), padding="VALID",
        dimension_numbers=("NCHW", "HWIO", "NCHW"))
    return out + params["b4"].reshape(1, -1, 1, 1)


if __name__ == "__main__":
    key = jax.random.PRNGKey(0)
    ks = jax.random.split(key, 11)
    N, Cin, H, W = 2, 4, 16, 16
    couts = (4, 4, 4, 8)                 # nchannels_out
    c_cat = sum(couts[:3])

    params = {
        "w1": 0.15 * jax.random.normal(ks[0], (3, 3, Cin, couts[0]), jnp.float32),
        "b1": 0.05 * jax.random.normal(ks[1], (couts[0],), jnp.float32),
        "w2": 0.10 * jax.random.normal(ks[2], (5, 5, Cin, couts[1]), jnp.float32),
        "b2": 0.05 * jax.random.normal(ks[3], (couts[1],), jnp.float32),
        "w3": 0.07 * jax.random.normal(ks[4], (7, 7, Cin, couts[2]), jnp.float32),
        "b3": 0.05 * jax.random.normal(ks[5], (couts[2],), jnp.float32),
        "gamma": 1.0 + 0.1 * jax.random.normal(ks[6], (c_cat,), jnp.float32),
        "beta": 0.1 * jax.random.normal(ks[7], (c_cat,), jnp.float32),
        "w4": 0.2 * jax.random.normal(ks[8], (c_cat, couts[3]), jnp.float32),
        "b4": 0.05 * jax.random.normal(ks[9], (couts[3],), jnp.float32),
    }
    x = jax.random.normal(ks[10], (N, Cin, H, W), jnp.float32)

    out = jax.block_until_ready(jax.jit(multi_filter_layer)(x, params))
    ref = jax.block_until_ready(reference_forward(x, params))

    assert out.shape == (N, couts[3], H // 2, W // 2), out.shape
    err = float(jnp.max(jnp.abs(out - ref)))
    # bf16 MXU operands with f32 accumulation: expect O(1e-2) max abs deviation
    # from the f32 XLA reference.
    assert err < 3e-2, f"max abs err {err}"
    print("KERNEL_OK")
</pallas_src>

<mosaic_0001>
module attributes {stable_mosaic.version = 11 : i64} {
  func.func @_fused_kernel(%arg0: i32, %arg1: memref<128x256xbf16, #tpu.memory_space<vmem>>, %arg2: memref<256x12xbf16, #tpu.memory_space<vmem>>, %arg3: memref<1x12xf32, #tpu.memory_space<vmem>>, %arg4: memref<1x12xf32, #tpu.memory_space<vmem>>, %arg5: memref<1x12xf32, #tpu.memory_space<vmem>>, %arg6: memref<12x8xbf16, #tpu.memory_space<vmem>>, %arg7: memref<1x8xf32, #tpu.memory_space<vmem>>, %arg8: memref<128x8xf32, #tpu.memory_space<vmem>>, %arg9: memref<128x12xf32, #tpu.memory_space<vmem>>, %arg10: memref<1x12xf32, #tpu.memory_space<vmem>>, %arg11: memref<1x12xf32, #tpu.memory_space<vmem>>) attributes {dimension_semantics = [#tpu.dimension_semantics<arbitrary>], iteration_bounds = array<i64: 4>, scalar_prefetch = 0 : i64, scratch_operands = 3 : i64, tpu.core_type = #tpu.core_type<tc>, window_params = [{transform_indices = @transform_0, window_bounds = array<i64: 128, 256>}, {pipeline_mode = #tpu.pipeline_mode<synchronous>, transform_indices = @transform_1, window_bounds = array<i64: 256, 12>}, {pipeline_mode = #tpu.pipeline_mode<synchronous>, transform_indices = @transform_2, window_bounds = array<i64: 1, 12>}, {pipeline_mode = #tpu.pipeline_mode<synchronous>, transform_indices = @transform_3, window_bounds = array<i64: 1, 12>}, {pipeline_mode = #tpu.pipeline_mode<synchronous>, transform_indices = @transform_4, window_bounds = array<i64: 1, 12>}, {pipeline_mode = #tpu.pipeline_mode<synchronous>, transform_indices = @transform_5, window_bounds = array<i64: 12, 8>}, {pipeline_mode = #tpu.pipeline_mode<synchronous>, transform_indices = @transform_6, window_bounds = array<i64: 1, 8>}, {pipeline_mode = #tpu.pipeline_mode<synchronous>, transform_indices = @transform_7, window_bounds = array<i64: 128, 8>}]} {
    %c0_i32 = arith.constant 0 : i32
    %0 = arith.cmpi eq, %arg0, %c0_i32 : i32
    %1 = arith.extui %0 : i1 to i32
    %c0_i32_0 = arith.constant 0 : i32
    %2 = arith.cmpi ne, %1, %c0_i32_0 : i32
    scf.if %2 {
      %cst_18 = arith.constant 0.000000e+00 : f32
      %26 = vector.broadcast %cst_18 : f32 to vector<1x12xf32>
      %c0_19 = arith.constant 0 : index
      %c0_20 = arith.constant 0 : index
      %27 = vector.load %arg10[%c0_19, %c0_20] : memref<1x12xf32, #tpu.memory_space<vmem>>, vector<1x12xf32>
      tpu.vector_store %arg10[%c0_19, %c0_20], %26 {strides = array<i32>} : memref<1x12xf32, #tpu.memory_space<vmem>>, vector<1x12xf32>,
      %cst_21 = arith.constant 0.000000e+00 : f32
      %28 = vector.broadcast %cst_21 : f32 to vector<1x12xf32>
      %c0_22 = arith.constant 0 : index
      %c0_23 = arith.constant 0 : index
      %29 = vector.load %arg11[%c0_22, %c0_23] : memref<1x12xf32, #tpu.memory_space<vmem>>, vector<1x12xf32>
      tpu.vector_store %arg11[%c0_22, %c0_23], %28 {strides = array<i32>} : memref<1x12xf32, #tpu.memory_space<vmem>>, vector<1x12xf32>,
    } else {
    }
    %c0 = arith.constant 0 : index
    %c0_1 = arith.constant 0 : index
    %3 = vector.load %arg1[%c0, %c0_1] : memref<128x256xbf16, #tpu.memory_space<vmem>>, vector<128x256xbf16>
    %c0_2 = arith.constant 0 : index
    %c0_3 = arith.constant 0 : index
    %4 = vector.load %arg2[%c0_2, %c0_3] : memref<256x12xbf16, #tpu.memory_space<vmem>>, vector<256x12xbf16>
    %cst = arith.constant dense<0.000000e+00> : vector<128x12xf32>
    %5 = tpu.matmul %3, %4, %cst {dimension_numbers = #tpu.dot_dimension_numbers<[1], [0], [0], [1], [0, 0, 1, 1], [], []>} : vector<128x256xbf16>, vector<256x12xbf16>, vector<128x12xf32> -> vector<128x12xf32>
    %c0_4 = arith.constant 0 : index
    %c0_5 = arith.constant 0 : index
    %6 = vector.load %arg3[%c0_4, %c0_5] : memref<1x12xf32, #tpu.memory_space<vmem>>, vector<1x12xf32>
    %7 = vector.broadcast %6 : vector<1x12xf32> to vector<128x12xf32>
    %8 = arith.addf %5, %7 : vector<128x12xf32>
    %c0_6 = arith.constant 0 : index
    %c0_7 = arith.constant 0 : index
    %9 = vector.load %arg10[%c0_6, %c0_7] : memref<1x12xf32, #tpu.memory_space<vmem>>, vector<1x12xf32>
    %cst_8 = arith.constant dense<0.000000e+00> : vector<12xf32>
    %10 = vector.multi_reduction <add>, %8, %cst_8 [0] : vector<128x12xf32> to vector<12xf32>
    %11 = vector.shape_cast %10 : vector<12xf32> to vector<1x12xf32>
    %12 = arith.addf %9, %11 : vector<1x12xf32>
    %c0_9 = arith.constant 0 : index
    %c0_10 = arith.constant 0 : index
    %13 = vector.load %arg10[%c0_9, %c0_10] : memref<1x12xf32, #tpu.memory_space<vmem>>, vector<1x12xf32>
    tpu.vector_store %arg10[%c0_9, %c0_10], %12 {strides = array<i32>} : memref<1x12xf32, #tpu.memory_space<vmem>>, vector<1x12xf32>,
    %c0_11 = arith.constant 0 : index
    %c0_12 = arith.constant 0 : index
    %14 = vector.load %arg11[%c0_11, %c0_12] : memref<1x12xf32, #tpu.memory_space<vmem>>, vector<1x12xf32>
    %15 = arith.mulf %8, %8 : vector<128x12xf32>
    %cst_13 = arith.constant dense<0.000000e+00> : vector<12xf32>
    %16 = vector.multi_reduction <add>, %15, %cst_13 [0] : vector<128x12xf32> to vector<12xf32>
    %17 = vector.shape_cast %16 : vector<12xf32> to vector<1x12xf32>
    %18 = arith.addf %14, %17 : vector<1x12xf32>
    %c0_14 = arith.constant 0 : index
    %c0_15 = arith.constant 0 : index
    %19 = vector.load %arg11[%c0_14, %c0_15] : memref<1x12xf32, #tpu.memory_space<vmem>>, vector<1x12xf32>
    tpu.vector_store %arg11[%c0_14, %c0_15], %18 {strides = array<i32>} : memref<1x12xf32, #tpu.memory_space<vmem>>, vector<1x12xf32>,
    %c1_i32 = arith.constant 1 : i32
    %20 = arith.cmpi slt, %arg0, %c1_i32 : i32
    %21 = arith.extui %20 : i1 to i32
    %c0_i32_16 = arith.constant 0 : i32
    %22 = arith.cmpi ne, %21, %c0_i32_16 : i32
    scf.if %22 {
      %c128_i32 = arith.constant 128 : i32
      %26 = arith.muli %arg0, %c128_i32 : i32
      %27 = tpu.assume_multiple %26, 128 : i32
      %28 = arith.index_cast %27 : i32 to index
      %c0_18 = arith.constant 0 : index
      %29 = vector.load %arg9[%28, %c0_18] : memref<128x12xf32, #tpu.memory_space<vmem>>, vector<128x12xf32>
      tpu.vector_store %arg9[%28, %c0_18], %8 {strides = array<i32>} : memref<128x12xf32, #tpu.memory_space<vmem>>, vector<128x12xf32>,
    } else {
    }
    %c3_i32 = arith.constant 3 : i32
    %23 = arith.cmpi eq, %arg0, %c3_i32 : i32
    %24 = arith.extui %23 : i1 to i32
    %c0_i32_17 = arith.constant 0 : i32
    %25 = arith.cmpi ne, %24, %c0_i32_17 : i32
    scf.if %25 {
      %c0_18 = arith.constant 0 : index
      %c0_19 = arith.constant 0 : index
      %26 = vector.load %arg10[%c0_18, %c0_19] : memref<1x12xf32, #tpu.memory_space<vmem>>, vector<1x12xf32>
      %cst_20 = arith.constant 5.120000e+02 : f32
      %27 = vector.broadcast %cst_20 : f32 to vector<1x12xf32>
      %28 = arith.divf %26, %27 : vector<1x12xf32>
      %c0_21 = arith.constant 0 : index
      %c0_22 = arith.constant 0 : index
      %29 = vector.load %arg11[%c0_21, %c0_22] : memref<1x12xf32, #tpu.memory_space<vmem>>, vector<1x12xf32>
      %cst_23 = arith.constant 5.120000e+02 : f32
      %30 = vector.broadcast %cst_23 : f32 to vector<1x12xf32>
      %31 = arith.divf %29, %30 : vector<1x12xf32>
      %32 = arith.mulf %28, %28 : vector<1x12xf32>
      %33 = arith.subf %31, %32 : vector<1x12xf32>
      %c0_24 = arith.constant 0 : index
      %c0_25 = arith.constant 0 : index
      %34 = vector.load %arg4[%c0_24, %c0_25] : memref<1x12xf32, #tpu.memory_space<vmem>>, vector<1x12xf32>
      %cst_26 = arith.constant 9.99999974E-6 : f32
      %35 = vector.broadcast %cst_26 : f32 to vector<1x12xf32>
      %36 = arith.addf %33, %35 : vector<1x12xf32>
      %37 = math.rsqrt %36 : vector<1x12xf32>
      %38 = arith.mulf %34, %37 : vector<1x12xf32>
      %c0_27 = arith.constant 0 : index
      %c0_28 = arith.constant 0 : index
      %39 = vector.load %arg5[%c0_27, %c0_28] : memref<1x12xf32, #tpu.memory_space<vmem>>, vector<1x12xf32>
      %40 = arith.mulf %28, %38 : vector<1x12xf32>
      %41 = arith.subf %39, %40 : vector<1x12xf32>
      %c0_29 = arith.constant 0 : index
      %c0_30 = arith.constant 0 : index
      %42 = vector.load %arg9[%c0_29, %c0_30] : memref<128x12xf32, #tpu.memory_space<vmem>>, vector<128x12xf32>
      %43 = vector.broadcast %38 : vector<1x12xf32> to vector<128x12xf32>
      %44 = arith.mulf %42, %43 : vector<128x12xf32>
      %45 = vector.broadcast %41 : vector<1x12xf32> to vector<128x12xf32>
      %46 = arith.addf %44, %45 : vector<128x12xf32>
      %cst_31 = arith.constant 0.000000e+00 : f32
      %47 = vector.broadcast %cst_31 : f32 to vector<128x12xf32>
      %48 = arith.maximumf %46, %47 : vector<128x12xf32>
      %49 = arith.truncf %48 : vector<128x12xf32> to vector<128x12xbf16>
      %c0_32 = arith.constant 0 : index
      %c0_33 = arith.constant 0 : index
      %50 = vector.load %arg6[%c0_32, %c0_33] : memref<12x8xbf16, #tpu.memory_space<vmem>>, vector<12x8xbf16>
      %cst_34 = arith.constant dense<0.000000e+00> : vector<128x8xf32>
      %51 = tpu.matmul %49, %50, %cst_34 {dimension_numbers = #tpu.dot_dimension_numbers<[1], [0], [0], [1], [0, 0, 1, 1], [], []>} : vector<128x12xbf16>, vector<12x8xbf16>, vector<128x8xf32> -> vector<128x8xf32>
      %c0_35 = arith.constant 0 : index
      %c0_36 = arith.constant 0 : index
      %52 = vector.load %arg7[%c0_35, %c0_36] : memref<1x8xf32, #tpu.memory_space<vmem>>, vector<1x8xf32>
      %53 = vector.broadcast %52 : vector<1x8xf32> to vector<128x8xf32>
      %54 = arith.addf %51, %53 : vector<128x8xf32>
      %c0_37 = arith.constant 0 : index
      %c0_38 = arith.constant 0 : index
      %55 = vector.load %arg8[%c0_37, %c0_38] : memref<128x8xf32, #tpu.memory_space<vmem>>, vector<128x8xf32>
      tpu.vector_store %arg8[%c0_37, %c0_38], %54 {strides = array<i32>} : memref<128x8xf32, #tpu.memory_space<vmem>>, vector<128x8xf32>,
    } else {
    }
    return
  }
  func.func @transform_0(%arg0: i32) -> (i32, i32) {
    %c0_i32 = arith.constant 0 : i32
    %c0_i32_0 = arith.constant 0 : i32
    return %arg0, %c0_i32 : i32, i32
  }
  func.func @transform_1(%arg0: i32) -> (i32, i32) {
    %c0_i32 = arith.constant 0 : i32
    %c0_i32_0 = arith.constant 0 : i32
    %c0_i32_1 = arith.constant 0 : i32
    return %c0_i32, %c0_i32_0 : i32, i32
  }
  func.func @transform_2(%arg0: i32) -> (i32, i32) {
    %c0_i32 = arith.constant 0 : i32
    %c0_i32_0 = arith.constant 0 : i32
    %c0_i32_1 = arith.constant 0 : i32
    return %c0_i32, %c0_i32_0 : i32, i32
  }
  func.func @transform_3(%arg0: i32) -> (i32, i32) {
    %c0_i32 = arith.constant 0 : i32
    %c0_i32_0 = arith.constant 0 : i32
    %c0_i32_1 = arith.constant 0 : i32
    return %c0_i32, %c0_i32_0 : i32, i32
  }
  func.func @transform_4(%arg0: i32) -> (i32, i32) {
    %c0_i32 = arith.constant 0 : i32
    %c0_i32_0 = arith.constant 0 : i32
    %c0_i32_1 = arith.constant 0 : i32
    return %c0_i32, %c0_i32_0 : i32, i32
  }
  func.func @transform_5(%arg0: i32) -> (i32, i32) {
    %c0_i32 = arith.constant 0 : i32
    %c0_i32_0 = arith.constant 0 : i32
    %c0_i32_1 = arith.constant 0 : i32
    return %c0_i32, %c0_i32_0 : i32, i32
  }
  func.func @transform_6(%arg0: i32) -> (i32, i32) {
    %c0_i32 = arith.constant 0 : i32
    %c0_i32_0 = arith.constant 0 : i32
    %c0_i32_1 = arith.constant 0 : i32
    return %c0_i32, %c0_i32_0 : i32, i32
  }
  func.func @transform_7(%arg0: i32) -> (i32, i32) {
    %c0_i32 = arith.constant 0 : i32
    %c0_i32_0 = arith.constant 0 : i32
    %c0_i32_1 = arith.constant 0 : i32
    return %c0_i32, %c0_i32_0 : i32, i32
  }
}

</mosaic_0001>

<llo_original>
// kernel: multi_filter_layer.1
$region0: #{multi_filter_layer.1}
  #allocation0 [shape = 'u32[]', space=smem, size = 0x4, offset = 0x4, fixed_abs, tag = 'smem constant byte address 0x4 - core index']
  #allocation1 [shape = 'u32[144,128]{1,0:T(1,128)}', space=vmem, size = 0x12000, scoped, tag = 'internal scratch']
  #allocation2 [shape = 'f32[128,12]{1,0:T(8,128)}', space=vmem, size = 0x10000, scoped, tag = 'scratch operand']
  #allocation3 [shape = 'f32[1,12]{1,0:T(1,128)}', space=vmem, size = 0x200, scoped, tag = 'scratch operand']
  #allocation4 [shape = 'f32[1,12]{1,0:T(1,128)}', space=vmem, size = 0x200, scoped, tag = 'scratch operand']
  %s0 = inlined_call_operand.vmem [shape: bf16[512,256], index: 0, kind: input, shape index: {}]
  %s1 = inlined_call_operand.vmem [shape: bf16[256,12], index: 1, kind: input, shape index: {}]
  %s2 = inlined_call_operand.vmem [shape: f32[1,12], index: 2, kind: input, shape index: {}]
  %s3 = inlined_call_operand.vmem [shape: f32[1,12], index: 3, kind: input, shape index: {}]
  %s4 = inlined_call_operand.vmem [shape: f32[1,12], index: 4, kind: input, shape index: {}]
  %s5 = inlined_call_operand.vmem [shape: bf16[12,8], index: 5, kind: input, shape index: {}]
  %s6 = inlined_call_operand.vmem [shape: f32[1,8], index: 6, kind: input, shape index: {}]
  %s7 = inlined_call_operand.vmem [shape: f32[128,8], index: 7, kind: output, shape index: {}]
  %s8 = sld [smem:[#allocation0]]
  $region73: #{multi_filter_layer.1} parent=0
    _
  %s10 = ssub.s32 1, %s8
  %s11 = scalar_select 0, %s10, %s8
  loop: start=0, step=1, limit=6
  $region2: #{multi_filter_layer.1} parent=0 // loop_pre_header
    _
  $region3: #{multi_filter_layer.1} parent=0 // loop_header
    %s13 = sphi 0, %s17
    %p14 = scmp.ge.s32.totalorder %s13, 6
    %s23 = sphi 0, %s25
    %s26 = sphi 0, %s23
    %s27 = sphi 0, %s26
    %s43 = sphi 0, %s27
    %s47 = sphi 0, %s47
    %s49 = sphi 0, %s47
    %s50 = sphi 0, %s49
    %s64 = sphi 0, %s50
    %s68 = sphi 0, %s68
    %s70 = sphi 0, %s68
    %s71 = sphi 0, %s70
    %s85 = sphi 0, %s71
    %s89 = sphi 0, %s89
    %s91 = sphi 0, %s89
    %s92 = sphi 0, %s91
    %s106 = sphi 0, %s92
    %s110 = sphi 0, %s110
    %s112 = sphi 0, %s110
    %s113 = sphi 0, %s112
    %s127 = sphi 0, %s113
    %s131 = sphi 0, %s131
    %s133 = sphi 0, %s131
    %s134 = sphi 0, %s133
    %s148 = sphi 0, %s134
    %s152 = sphi 0, %s152
    %s154 = sphi 0, %s152
    %s155 = sphi 0, %s154
    %s169 = sphi 0, %s155
    %s173 = sphi 0, %s173
    %s175 = sphi 0, %s173
    %s176 = sphi 0, %s175
    %s190 = sphi 0, %s176
  $region4: #{multi_filter_layer.1} parent=0 // loop_header_branch
    %16 = sbr.rel (%p14) target = $region8
  $region5: #{multi_filter_layer.1} parent=0 // loop_body
    %s18 = ssub.s32 %s13, 1
    %s19 = ssub.s32 %s13, 2
    %s20 = sadd.s32 %s13, 1
    %s21 = ssub.s32 %s13, %s20
    %p22 = scmp.eq.s32.totalorder %s21, 0
    %s24 = sadd.s32 %s23, 1
    %s25 = scalar_select %p22, %s23, %s24
    %p28 = pneg %p22
    %p29 = scmp.eq.s32.totalorder %s13, 3
    %p30 = por %p28, %p29
    %p31 = scmp.ne.s32.totalorder %s23, %s26
    %p32 = scmp.eq.s32.totalorder %s13, 0
    %p33 = por %p31, %p32
    %p34 = scmp.ne.s32.totalorder %s23, %s26
    %p35 = scmp.eq.s32.totalorder %s18, 3
    %p36 = por %p34, %p35
    %p37 = scmp.ne.s32.totalorder %s26, %s27
    %p38 = scmp.eq.s32.totalorder %s18, 0
    %p39 = por %p37, %p38
    %p40 = scmp.ne.s32.totalorder %s26, %s27
    %p41 = scmp.eq.s32.totalorder %s19, 3
    %p42 = por %p40, %p41
    %p44 = scmp.ne.s32.totalorder %s27, %s43
    %p45 = scmp.eq.s32.totalorder %s19, 0
    %p46 = por %p44, %p45
    %s48 = sadd.s32 %s47, 1
    %p51 = scmp.eq.s32.totalorder %s13, 3
    %p52 = scmp.ne.s32.totalorder %s47, %s49
    %p53 = scmp.eq.s32.totalorder %s13, 0
    %p54 = por %p52, %p53
    %p55 = scmp.ne.s32.totalorder %s47, %s49
    %p56 = scmp.eq.s32.totalorder %s18, 3
    %p57 = por %p55, %p56
    %p58 = scmp.ne.s32.totalorder %s49, %s50
    %p59 = scmp.eq.s32.totalorder %s18, 0
    %p60 = por %p58, %p59
    %p61 = scmp.ne.s32.totalorder %s49, %s50
    %p62 = scmp.eq.s32.totalorder %s19, 3
    %p63 = por %p61, %p62
    %p65 = scmp.ne.s32.totalorder %s50, %s64
    %p66 = scmp.eq.s32.totalorder %s19, 0
    %p67 = por %p65, %p66
    %s69 = sadd.s32 %s68, 1
    %p72 = scmp.eq.s32.totalorder %s13, 3
    %p73 = scmp.ne.s32.totalorder %s68, %s70
    %p74 = scmp.eq.s32.totalorder %s13, 0
    %p75 = por %p73, %p74
    %p76 = scmp.ne.s32.totalorder %s68, %s70
    %p77 = scmp.eq.s32.totalorder %s18, 3
    %p78 = por %p76, %p77
    %p79 = scmp.ne.s32.totalorder %s70, %s71
    %p80 = scmp.eq.s32.totalorder %s18, 0
    %p81 = por %p79, %p80
    %p82 = scmp.ne.s32.totalorder %s70, %s71
    %p83 = scmp.eq.s32.totalorder %s19, 3
    %p84 = por %p82, %p83
    %p86 = scmp.ne.s32.totalorder %s71, %s85
    %p87 = scmp.eq.s32.totalorder %s19, 0
    %p88 = por %p86, %p87
    %s90 = sadd.s32 %s89, 1
    %p93 = scmp.eq.s32.totalorder %s13, 3
    %p94 = scmp.ne.s32.totalorder %s89, %s91
    %p95 = scmp.eq.s32.totalorder %s13, 0
    %p96 = por %p94, %p95
    %p97 = scmp.ne.s32.totalorder %s89, %s91
    %p98 = scmp.eq.s32.totalorder %s18, 3
    %p99 = por %p97, %p98
    %p100 = scmp.ne.s32.totalorder %s91, %s92
    %p101 = scmp.eq.s32.totalorder %s18, 0
    %p102 = por %p100, %p101
    %p103 = scmp.ne.s32.totalorder %s91, %s92
    %p104 = scmp.eq.s32.totalorder %s19, 3
    %p105 = por %p103, %p104
    %p107 = scmp.ne.s32.totalorder %s92, %s106
    %p108 = scmp.eq.s32.totalorder %s19, 0
    %p109 = por %p107, %p108
    %s111 = sadd.s32 %s110, 1
    %p114 = scmp.eq.s32.totalorder %s13, 3
    %p115 = scmp.ne.s32.totalorder %s110, %s112
    %p116 = scmp.eq.s32.totalorder %s13, 0
    %p117 = por %p115, %p116
    %p118 = scmp.ne.s32.totalorder %s110, %s112
    %p119 = scmp.eq.s32.totalorder %s18, 3
    %p120 = por %p118, %p119
    %p121 = scmp.ne.s32.totalorder %s112, %s113
    %p122 = scmp.eq.s32.totalorder %s18, 0
    %p123 = por %p121, %p122
    %p124 = scmp.ne.s32.totalorder %s112, %s113
    %p125 = scmp.eq.s32.totalorder %s19, 3
    %p126 = por %p124, %p125
    %p128 = scmp.ne.s32.totalorder %s113, %s127
    %p129 = scmp.eq.s32.totalorder %s19, 0
    %p130 = por %p128, %p129
    %s132 = sadd.s32 %s131, 1
    %p135 = scmp.eq.s32.totalorder %s13, 3
    %p136 = scmp.ne.s32.totalorder %s131, %s133
    %p137 = scmp.eq.s32.totalorder %s13, 0
    %p138 = por %p136, %p137
    %p139 = scmp.ne.s32.totalorder %s131, %s133
    %p140 = scmp.eq.s32.totalorder %s18, 3
    %p141 = por %p139, %p140
    %p142 = scmp.ne.s32.totalorder %s133, %s134
    %p143 = scmp.eq.s32.totalorder %s18, 0
    %p144 = por %p142, %p143
    %p145 = scmp.ne.s32.totalorder %s133, %s134
    %p146 = scmp.eq.s32.totalorder %s19, 3
    %p147 = por %p145, %p146
    %p149 = scmp.ne.s32.totalorder %s134, %s148
    %p150 = scmp.eq.s32.totalorder %s19, 0
    %p151 = por %p149, %p150
    %s153 = sadd.s32 %s152, 1
    %p156 = scmp.eq.s32.totalorder %s13, 3
    %p157 = scmp.ne.s32.totalorder %s152, %s154
    %p158 = scmp.eq.s32.totalorder %s13, 0
    %p159 = por %p157, %p158
    %p160 = scmp.ne.s32.totalorder %s152, %s154
    %p161 = scmp.eq.s32.totalorder %s18, 3
    %p162 = por %p160, %p161
    %p163 = scmp.ne.s32.totalorder %s154, %s155
    %p164 = scmp.eq.s32.totalorder %s18, 0
    %p165 = por %p163, %p164
    %p166 = scmp.ne.s32.totalorder %s154, %s155
    %p167 = scmp.eq.s32.totalorder %s19, 3
    %p168 = por %p166, %p167
    %p170 = scmp.ne.s32.totalorder %s155, %s169
    %p171 = scmp.eq.s32.totalorder %s19, 0
    %p172 = por %p170, %p171
    %s174 = sadd.s32 %s173, 1
    %p177 = scmp.eq.s32.totalorder %s13, 3
    %p178 = scmp.ne.s32.totalorder %s173, %s175
    %p179 = scmp.eq.s32.totalorder %s13, 0
    %p180 = por %p178, %p179
    %p181 = scmp.ne.s32.totalorder %s173, %s175
    %p182 = scmp.eq.s32.totalorder %s18, 3
    %p183 = por %p181, %p182
    %p184 = scmp.ne.s32.totalorder %s175, %s176
    %p185 = scmp.eq.s32.totalorder %s18, 0
    %p186 = por %p184, %p185
    %p187 = scmp.ne.s32.totalorder %s175, %s176
    %p188 = scmp.eq.s32.totalorder %s19, 3
    %p189 = por %p187, %p188
    %p191 = scmp.ne.s32.totalorder %s176, %s190
    %p192 = scmp.eq.s32.totalorder %s19, 0
    %p193 = por %p191, %p192
    %p194 = scmp.le.s32.totalorder 1, %s13
    %p195 = scmp.lt.s32.totalorder %s13, 5
    %p196 = pnand %p194, %p195
    %p197 = pneg %p196
    // Predicated region
    $region9: #{multi_filter_layer.1} parent=5 // pred_check
      _
    $region10: #{multi_filter_layer.1} parent=5 // pred_check_branch
      %199 = sbr.rel (%p196) target = $region12
    $region11: #{multi_filter_layer.1} parent=5 // pred_region
      %s200 = ssub.s32 %s13, 1
      // Predicated region
      $region13: #{multi_filter_layer.1} parent=11 // pred_check
        %p201 = pneg %p60
      $region14: #{multi_filter_layer.1} parent=11 // pred_check_branch
        %203 = sbr.rel (%p201) target = $region16
      $region15: #{multi_filter_layer.1} parent=11 // pred_region
        _
      $region16: #{multi_filter_layer.1} parent=11 // pred_fallthru
        _
      // Predicated region
      $region17: #{multi_filter_layer.1} parent=11 // pred_check
        %p204 = pneg %p81
      $region18: #{multi_filter_layer.1} parent=11 // pred_check_branch
        %206 = sbr.rel (%p204) target = $region20
      $region19: #{multi_filter_layer.1} parent=11 // pred_region
        _
      $region20: #{multi_filter_layer.1} parent=11 // pred_fallthru
        _
      // Predicated region
      $region21: #{multi_filter_layer.1} parent=11 // pred_check
        %p207 = pneg %p102
      $region22: #{multi_filter_layer.1} parent=11 // pred_check_branch
        %209 = sbr.rel (%p207) target = $region24
      $region23: #{multi_filter_layer.1} parent=11 // pred_region
        _
      $region24: #{multi_filter_layer.1} parent=11 // pred_fallthru
        _
      // Predicated region
      $region25: #{multi_filter_layer.1} parent=11 // pred_check
        %p210 = pneg %p123
      $region26: #{multi_filter_layer.1} parent=11 // pred_check_branch
        %212 = sbr.rel (%p210) target = $region28
      $region27: #{multi_filter_layer.1} parent=11 // pred_region
        _
      $region28: #{multi_filter_layer.1} parent=11 // pred_fallthru
        _
      // Predicated region
      $region29: #{multi_filter_layer.1} parent=11 // pred_check
        %p213 = pneg %p144
      $region30: #{multi_filter_layer.1} parent=11 // pred_check_branch
        %215 = sbr.rel (%p213) target = $region32
      $region31: #{multi_filter_layer.1} parent=11 // pred_region
        _
      $region32: #{multi_filter_layer.1} parent=11 // pred_fallthru
        _
      // Predicated region
      $region33: #{multi_filter_layer.1} parent=11 // pred_check
        %p216 = pneg %p165
      $region34: #{multi_filter_layer.1} parent=11 // pred_check_branch
        %218 = sbr.rel (%p216) target = $region36
      $region35: #{multi_filter_layer.1} parent=11 // pred_region
        _
      $region36: #{multi_filter_layer.1} parent=11 // pred_fallthru
        _
    $region12: #{multi_filter_layer.1} parent=5 // pred_fallthru
      _
    %p219 = scmp.lt.s32.totalorder %s13, 4
    // Predicated region
    $region37: #{multi_filter_layer.1} parent=5 // pred_check
      %p220 = pneg %p219
    $region38: #{multi_filter_layer.1} parent=5 // pred_check_branch
      %222 = sbr.rel (%p220) target = $region40
    $region39: #{multi_filter_layer.1} parent=5 // pred_region
      // Predicated region
      $region41: #{multi_filter_layer.1} parent=39 // pred_check
        %p223 = pneg %p33
      $region42: #{multi_filter_layer.1} parent=39 // pred_check_branch
        %225 = sbr.rel (%p223) target = $region44
      $region43: #{multi_filter_layer.1} parent=39 // pred_region
        %s226 = smul.u32 16, %s13
        %p227 = scmp.lt.s32.totalorder %s226, 63
        %s228 = scalar_select %p227, %s226, 63
        %s229 = smul.addr %s228, 2
        %s230 = smul.addr %s229, 4
        %s231 = scalar_lea.vmem %s0, %s230
        %s232 = smul.u32 16, %s13
      $region44: #{multi_filter_layer.1} parent=39 // pred_fallthru
        _
    $region40: #{multi_filter_layer.1} parent=5 // pred_fallthru
      _
    %p233 = scmp.le.s32.totalorder 1, %s13
    %p234 = scmp.lt.s32.totalorder %s13, 5
    %p235 = pnand %p233, %p234
    %p236 = pneg %p235
    // Predicated region
    $region45: #{multi_filter_layer.1} parent=5 // pred_check
      _
    $region46: #{multi_filter_layer.1} parent=5 // pred_check_branch
      %238 = sbr.rel (%p235) target = $region48
    $region47: #{multi_filter_layer.1} parent=5 // pred_region
      %s239 = ssub.s32 %s13, 1
      %s240 = smul.u32 16, %s18
      %p241 = scmp.lt.s32.totalorder %s240, 63
      %s242 = scalar_select %p241, %s240, 63
      %s243 = smul.addr %s242, 2
      %s244 = smul.addr %s243, 4
      %s245 = scalar_lea.vmem %s0, %s244
      %p246 = pneg %p39
      %p247 = pneg %p36
      %p248 = pneg %p60
      %p249 = pneg %p57
      %p250 = pneg %p81
      %p251 = pneg %p78
      %p252 = pneg %p102
      %p253 = pneg %p99
      %p254 = pneg %p123
      %p255 = pneg %p120
      %p256 = pneg %p144
      %p257 = pneg %p141
      %p258 = pneg %p165
      %p259 = pneg %p162
      %p260 = pneg %p186
      %p261 = pneg %p183
      %s262 = smul.u32 16, %s18
      %p263 = scmp.lt.s32.totalorder %s262, 63
      %s264 = scalar_select %p263, %s262, 63
      %s265 = smul.addr %s264, 2
      %s266 = smul.addr %s265, 4
      %s267 = scalar_lea.vmem %s0, %s266
      %s268 = smul.u32 16, %s18
      %p270 = scmp.eq.s32.totalorder %s18, 0
      // Predicated region
      $region49: #{multi_filter_layer.1} parent=47 // pred_check
        %p271 = pneg %p270
      $region50: #{multi_filter_layer.1} parent=47 // pred_check_branch
        %273 = sbr.rel (%p271) target = $region52
      $region51: #{multi_filter_layer.1} parent=47 // pred_region
        %vm274 = vcmask 90112
        %275 = vst.msk [vmem:[#allocation3] sm:$0x1] %vm274, 0.0
        %276 = vst.msk [vmem:[#allocation4] sm:$0x1] %vm274, 0.0
      $region52: #{multi_filter_layer.1} parent=47 // pred_fallthru
        _
      %v277 = vld [vmem:[%s267] sm:$0xff]
      %v278 = vld [vmem:[%s267 + $0x8] sm:$0xff]
      %v279 = vld [vmem:[%s267 + $0x10] sm:$0xff]
      %v280 = vld [vmem:[%s267 + $0x18] sm:$0xff]
      %v281 = vld [vmem:[%s267 + $0x20] sm:$0xff]
      %v282 = vld [vmem:[%s267 + $0x28] sm:$0xff]
      %v283 = vld [vmem:[%s267 + $0x30] sm:$0xff]
      %v284 = vld [vmem:[%s267 + $0x38] sm:$0xff]
      %v285 = vld [vmem:[%s267 + $0x40] sm:$0xff]
      %v286 = vld [vmem:[%s267 + $0x48] sm:$0xff]
      %v287 = vld [vmem:[%s267 + $0x50] sm:$0xff]
      %v288 = vld [vmem:[%s267 + $0x58] sm:$0xff]
      %v289 = vld [vmem:[%s267 + $0x60] sm:$0xff]
      %v290 = vld [vmem:[%s267 + $0x68] sm:$0xff]
      %v291 = vld [vmem:[%s267 + $0x70] sm:$0xff]
      %v292 = vld [vmem:[%s267 + $0x78] sm:$0xff]
      %v293 = vld [vmem:[%s1] sm:$0xf]
      %v294 = vld [vmem:[%s1 + $0x4] sm:$0xf]
      %v295 = vld [vmem:[%s1 + $0x8] sm:$0xf]
      %v296 = vld [vmem:[%s1 + $0xc] sm:$0xf]
      %v297 = vld [vmem:[%s1 + $0x10] sm:$0xf]
      %v298 = vld [vmem:[%s1 + $0x14] sm:$0xf]
      %v299 = vld [vmem:[%s1 + $0x18] sm:$0xf]
      %v300 = vld [vmem:[%s1 + $0x1c] sm:$0xf]
      %v301 = vld [vmem:[%s1 + $0x20] sm:$0xf]
      %v302 = vld [vmem:[%s1 + $0x24] sm:$0xf]
      %v303 = vld [vmem:[%s1 + $0x28] sm:$0xf]
      %v304 = vld [vmem:[%s1 + $0x2c] sm:$0xf]
      %v305 = vld [vmem:[%s1 + $0x30] sm:$0xf]
      %v306 = vld [vmem:[%s1 + $0x34] sm:$0xf]
      %v307 = vld [vmem:[%s1 + $0x38] sm:$0xf]
      %v308 = vld [vmem:[%s1 + $0x3c] sm:$0xf]
      %v309 = vld [vmem:[%s1 + $0x40] sm:$0xf]
      %v310 = vld [vmem:[%s1 + $0x44] sm:$0xf]
      %v311 = vld [vmem:[%s1 + $0x48] sm:$0xf]
      %v312 = vld [vmem:[%s1 + $0x4c] sm:$0xf]
      %v313 = vld [vmem:[%s1 + $0x50] sm:$0xf]
      %v314 = vld [vmem:[%s1 + $0x54] sm:$0xf]
      %v315 = vld [vmem:[%s1 + $0x58] sm:$0xf]
      %v316 = vld [vmem:[%s1 + $0x5c] sm:$0xf]
      %v317 = vld [vmem:[%s1 + $0x60] sm:$0xf]
      %v318 = vld [vmem:[%s1 + $0x64] sm:$0xf]
      %v319 = vld [vmem:[%s1 + $0x68] sm:$0xf]
      %v320 = vld [vmem:[%s1 + $0x6c] sm:$0xf]
      %v321 = vld [vmem:[%s1 + $0x70] sm:$0xf]
      %v322 = vld [vmem:[%s1 + $0x74] sm:$0xf]
      %v323 = vld [vmem:[%s1 + $0x78] sm:$0xf]
      %v324 = vld [vmem:[%s1 + $0x7c] sm:$0xf]
      %v325 = vld [vmem:[%s2] sm:$0x1]
      %v327 = vlaneseq
      %v328 = vshrl.u32 %v327, 7
      %v329 = vsub.s32 0, %v328
      %v330 = vrot.slane %v325, %v329
      %v348 = vunpack.c.l.b16 %v277
      %v349 = vunpack.c.h.b16 %v277
      %v350 = vunpack.c.l.b16 %v278
      %v351 = vunpack.c.h.b16 %v278
      %v352 = vunpack.c.l.b16 %v279
      %v353 = vunpack.c.h.b16 %v279
      %v354 = vunpack.c.l.b16 %v280
      %v355 = vunpack.c.h.b16 %v280
      %v356 = vunpack.c.l.b16 %v281
      %v357 = vunpack.c.h.b16 %v281
      %v358 = vunpack.c.l.b16 %v282
      %v359 = vunpack.c.h.b16 %v282
      %v360 = vunpack.c.l.b16 %v283
      %v361 = vunpack.c.h.b16 %v283
      %v362 = vunpack.c.l.b16 %v284
      %v363 = vunpack.c.h.b16 %v284
      %v364 = vunpack.c.l.b16 %v285
      %v365 = vunpack.c.h.b16 %v285
      %v366 = vunpack.c.l.b16 %v286
      %v367 = vunpack.c.h.b16 %v286
      %v368 = vunpack.c.l.b16 %v287
      %v369 = vunpack.c.h.b16 %v287
      %v370 = vunpack.c.l.b16 %v288
      %v371 = vunpack.c.h.b16 %v288
      %v372 = vunpack.c.l.b16 %v289
      %v373 = vunpack.c.h.b16 %v289
      %v374 = vunpack.c.l.b16 %v290
      %v375 = vunpack.c.h.b16 %v290
      %v376 = vunpack.c.l.b16 %v291
      %v377 = vunpack.c.h.b16 %v291
      %v378 = vunpack.c.l.b16 %v292
      %v379 = vunpack.c.h.b16 %v292
      %v380 = vpack.c.b16 %v350, %v348
      %v381 = vpack.c.b16 %v351, %v349
      %v382 = vpack.c.b16 %v354, %v352
      %v383 = vpack.c.b16 %v355, %v353
      %v384 = vpack.c.b16 %v358, %v356
      %v385 = vpack.c.b16 %v359, %v357
      %v386 = vpack.c.b16 %v362, %v360
      %v387 = vpack.c.b16 %v363, %v361
      %v388 = vpack.c.b16 %v366, %v364
      %v389 = vpack.c.b16 %v367, %v365
      %v390 = vpack.c.b16 %v370, %v368
      %v391 = vpack.c.b16 %v371, %v369
      %v392 = vpack.c.b16 %v374, %v372
      %v393 = vpack.c.b16 %v375, %v373
      %v394 = vpack.c.b16 %v378, %v376
      %v395 = vpack.c.b16 %v379, %v377
      %v444 = vunpack.c.l.b16 %v293
      %v445 = vunpack.c.l.b16 %v294
      %v446 = vunpack.c.l.b16 %v295
      %v447 = vunpack.c.l.b16 %v296
      %v448 = vunpack.c.l.b16 %v297
      %v449 = vunpack.c.l.b16 %v298
      %v450 = vunpack.c.l.b16 %v299
      %v451 = vunpack.c.l.b16 %v300
      %v452 = vunpack.c.l.b16 %v301
      %v453 = vunpack.c.l.b16 %v302
      %v454 = vunpack.c.l.b16 %v303
      %v455 = vunpack.c.l.b16 %v304
      %v456 = vunpack.c.l.b16 %v305
      %v457 = vunpack.c.l.b16 %v306
      %v458 = vunpack.c.l.b16 %v307
      %v459 = vunpack.c.l.b16 %v308
      %v460 = vunpack.c.l.b16 %v309
      %v461 = vunpack.c.l.b16 %v310
      %v462 = vunpack.c.l.b16 %v311
      %v463 = vunpack.c.l.b16 %v312
      %v464 = vunpack.c.l.b16 %v313
      %v465 = vunpack.c.l.b16 %v314
      %v466 = vunpack.c.l.b16 %v315
      %v467 = vunpack.c.l.b16 %v316
      %v468 = vunpack.c.l.b16 %v317
      %v469 = vunpack.c.l.b16 %v318
      %v470 = vunpack.c.l.b16 %v319
      %v471 = vunpack.c.l.b16 %v320
      %v472 = vunpack.c.l.b16 %v321
      %v473 = vunpack.c.l.b16 %v322
      %v474 = vunpack.c.l.b16 %v323
      %v475 = vunpack.c.l.b16 %v324
      %v476 = vpack.c.b16 %v445, %v444
      %v477 = vpack.c.b16 %v447, %v446
      %v478 = vpack.c.b16 %v449, %v448
      %v479 = vpack.c.b16 %v451, %v450
      %v480 = vpack.c.b16 %v453, %v452
      %v481 = vpack.c.b16 %v455, %v454
      %v482 = vpack.c.b16 %v457, %v456
      %v483 = vpack.c.b16 %v459, %v458
      %v484 = vpack.c.b16 %v461, %v460
      %v485 = vpack.c.b16 %v463, %v462
      %v486 = vpack.c.b16 %v465, %v464
      %v487 = vpack.c.b16 %v467, %v466
      %v488 = vpack.c.b16 %v469, %v468
      %v489 = vpack.c.b16 %v471, %v470
      %v490 = vpack.c.b16 %v473, %v472
      %v491 = vpack.c.b16 %v475, %v474
      %508 = vmatprep.subr.bf16.mxu0 0
      %509 = vmatpush1.bf16.msra.mxu0 %v476
      %510 = vmatprep.subr.bf16.mxu0 0
      %511 = vmatpush1.bf16.msra.mxu0 %v477
      %512 = vmatprep.subr.bf16.mxu0 0
      %513 = vmatpush1.bf16.msra.mxu0 %v478
      %514 = vmatprep.subr.bf16.mxu0 0
      %515 = vmatpush1.bf16.msra.mxu0 %v479
      %516 = vmatprep.subr.bf16.mxu0 0
      %517 = vmatpush1.bf16.msra.mxu0 %v480
      %518 = vmatprep.subr.bf16.mxu0 0
      %519 = vmatpush1.bf16.msra.mxu0 %v481
      %520 = vmatprep.subr.bf16.mxu0 0
      %521 = vmatpush1.bf16.msra.mxu0 %v482
      %522 = vmatprep.subr.bf16.mxu0 0
      %523 = vmatpush1.bf16.msra.mxu0 %v483
      %524 = vmatprep.subr.bf16.mxu0 0
      %525 = vmatpush1.bf16.msra.mxu0 %v484
      %526 = vmatprep.subr.bf16.mxu0 0
      %527 = vmatpush1.bf16.msra.mxu0 %v485
      %528 = vmatprep.subr.bf16.mxu0 0
      %529 = vmatpush1.bf16.msra.mxu0 %v486
      %530 = vmatprep.subr.bf16.mxu0 0
      %531 = vmatpush1.bf16.msra.mxu0 %v487
      %532 = vmatprep.subr.bf16.mxu0 0
      %533 = vmatpush1.bf16.msra.mxu0 %v488
      %534 = vmatprep.subr.bf16.mxu0 0
      %535 = vmatpush1.bf16.msra.mxu0 %v489
      %536 = vmatprep.subr.bf16.mxu0 0
      %537 = vmatpush1.bf16.msra.mxu0 %v490
      %538 = vmatprep.subr.bf16.mxu0 0
      %539 = vmatpush1.bf16.msra.mxu0 %v491
      %540 = vmatprep.mubr.bf16.mxu0 %v381
      %541 = vmatmul.mubr.bf16.gmra.mrb[0].mxu0 %v380
      %v542 = vpop.f32.mrb[0].mxu0
      %v543 = vadd.f32 %v330, %v542
      %v544 = vpop.f32.mrb[0].mxu0
      %v545 = vpop.f32.mrb[0].mxu0
      %v546 = vadd.f32 %v330, %v545
      %v547 = vpop.f32.mrb[0].mxu0
      %548 = vmatprep.mubr.bf16.mxu0 %v383
      %549 = vmatmul.mubr.bf16.gmra.mrb[0].mxu0 %v382
      %v550 = vpop.f32.mrb[0].mxu0
      %v551 = vadd.f32 %v330, %v550
      %v552 = vpop.f32.mrb[0].mxu0
      %v553 = vpop.f32.mrb[0].mxu0
      %v554 = vadd.f32 %v330, %v553
      %v555 = vpop.f32.mrb[0].mxu0
      %556 = vmatprep.mubr.bf16.mxu0 %v385
      %557 = vmatmul.mubr.bf16.gmra.mrb[0].mxu0 %v384
      %v558 = vpop.f32.mrb[0].mxu0
      %v559 = vadd.f32 %v330, %v558
      %v560 = vpop.f32.mrb[0].mxu0
      %v561 = vpop.f32.mrb[0].mxu0
      %v562 = vadd.f32 %v330, %v561
      %v563 = vpop.f32.mrb[0].mxu0
      %564 = vmatprep.mubr.bf16.mxu0 %v387
      %565 = vmatmul.mubr.bf16.gmra.mrb[0].mxu0 %v386
      %v566 = vpop.f32.mrb[0].mxu0
      %v567 = vadd.f32 %v330, %v566
      %v568 = vpop.f32.mrb[0].mxu0
      %v569 = vpop.f32.mrb[0].mxu0
      %v570 = vadd.f32 %v330, %v569
      %v571 = vpop.f32.mrb[0].mxu0
      %572 = vmatprep.mubr.bf16.mxu0 %v389
      %573 = vmatmul.mubr.bf16.gmra.mrb[0].mxu0 %v388
      %v574 = vpop.f32.mrb[0].mxu0
      %v575 = vadd.f32 %v330, %v574
      %v576 = vpop.f32.mrb[0].mxu0
      %v577 = vpop.f32.mrb[0].mxu0
      %v578 = vadd.f32 %v330, %v577
      %v579 = vpop.f32.mrb[0].mxu0
      %580 = vmatprep.mubr.bf16.mxu0 %v391
      %581 = vmatmul.mubr.bf16.gmra.mrb[0].mxu0 %v390
      %v582 = vpop.f32.mrb[0].mxu0
      %v583 = vadd.f32 %v330, %v582
      %v584 = vpop.f32.mrb[0].mxu0
      %v585 = vpop.f32.mrb[0].mxu0
      %v586 = vadd.f32 %v330, %v585
      %v587 = vpop.f32.mrb[0].mxu0
      %588 = vmatprep.mubr.bf16.mxu0 %v393
      %589 = vmatmul.mubr.bf16.gmra.mrb[0].mxu0 %v392
      %v590 = vpop.f32.mrb[0].mxu0
      %v591 = vadd.f32 %v330, %v590
      %v592 = vpop.f32.mrb[0].mxu0
      %v593 = vpop.f32.mrb[0].mxu0
      %v594 = vadd.f32 %v330, %v593
      %v595 = vpop.f32.mrb[0].mxu0
      %596 = vmatprep.mubr.bf16.mxu0 %v395
      %597 = vmatmul.mubr.bf16.gmra.mrb[0].mxu0 %v394
      %v598 = vpop.f32.mrb[0].mxu0
      %v599 = vadd.f32 %v330, %v598
      %v600 = vpop.f32.mrb[0].mxu0
      %v601 = vpop.f32.mrb[0].mxu0
      %v602 = vadd.f32 %v330, %v601
      %v603 = vpop.f32.mrb[0].mxu0
      %604 = vdwg.mxu0
      %v605 = vld [vmem:[#allocation3] sm:$0x1]
      %vm606 = vcmask 97280
      %v607 = vsel %vm606, %v543, 0.0
      %v608 = vsel %vm606, %v546, 0.0
      %v609 = vadd.f32 %v607, %v608
      %v610 = vsel %vm606, %v551, 0.0
      %v611 = vadd.f32 %v609, %v610
      %v612 = vsel %vm606, %v554, 0.0
      %v613 = vadd.f32 %v611, %v612
      %v614 = vsel %vm606, %v559, 0.0
      %v615 = vadd.f32 %v613, %v614
      %v616 = vsel %vm606, %v562, 0.0
      %v617 = vadd.f32 %v615, %v616
      %v618 = vsel %vm606, %v567, 0.0
      %v619 = vadd.f32 %v617, %v618
      %v620 = vsel %vm606, %v570, 0.0
      %v621 = vadd.f32 %v619, %v620
      %v622 = vsel %vm606, %v575, 0.0
      %v623 = vadd.f32 %v621, %v622
      %v624 = vsel %vm606, %v578, 0.0
      %v625 = vadd.f32 %v623, %v624
      %v626 = vsel %vm606, %v583, 0.0
      %v627 = vadd.f32 %v625, %v626
      %v628 = vsel %vm606, %v586, 0.0
      %v629 = vadd.f32 %v627, %v628
      %v630 = vsel %vm606, %v591, 0.0
      %v631 = vadd.f32 %v629, %v630
      %v632 = vsel %vm606, %v594, 0.0
      %v633 = vadd.f32 %v631, %v632
      %v634 = vsel %vm606, %v599, 0.0
      %v635 = vadd.f32 %v633, %v634
      %v636 = vsel %vm606, %v602, 0.0
      %v637 = vadd.f32 %v635, %v636
      %v638 = vrot.slane %v637, 4
      %v639 = vadd.f32 %v637, %v638
      %v640 = vrot.slane %v639, 2
      %v641 = vadd.f32 %v639, %v640
      %v642 = vrot.slane %v641, 1
      %v643 = vadd.f32 %v641, %v642
      %v644 = vadd.f32 %v605, %v643
      %vm645 = vcmask 90112
      %646 = vst.msk [vmem:[#allocation3] sm:$0x1] %vm645, %v644
      %v647 = vld [vmem:[#allocation4] sm:$0x1]
      %v648 = vmul.f32 %v543, %v543
      %v649 = vmul.f32 %v546, %v546
      %v650 = vmul.f32 %v551, %v551
      %v651 = vmul.f32 %v554, %v554
      %v652 = vmul.f32 %v559, %v559
      %v653 = vmul.f32 %v562, %v562
      %v654 = vmul.f32 %v567, %v567
      %v655 = vmul.f32 %v570, %v570
      %v656 = vmul.f32 %v575, %v575
      %v657 = vmul.f32 %v578, %v578
      %v658 = vmul.f32 %v583, %v583
      %v659 = vmul.f32 %v586, %v586
      %v660 = vmul.f32 %v591, %v591
      %v661 = vmul.f32 %v594, %v594
      %v662 = vmul.f32 %v599, %v599
      %v663 = vmul.f32 %v602, %v602
      %v664 = vsel %vm606, %v648, 0.0
      %v665 = vsel %vm606, %v649, 0.0
      %v666 = vadd.f32 %v664, %v665
      %v667 = vsel %vm606, %v650, 0.0
      %v668 = vadd.f32 %v666, %v667
      %v669 = vsel %vm606, %v651, 0.0
      %v670 = vadd.f32 %v668, %v669
      %v671 = vsel %vm606, %v652, 0.0
      %v672 = vadd.f32 %v670, %v671
      %v673 = vsel %vm606, %v653, 0.0
      %v674 = vadd.f32 %v672, %v673
      %v675 = vsel %vm606, %v654, 0.0
      %v676 = vadd.f32 %v674, %v675
      %v677 = vsel %vm606, %v655, 0.0
      %v678 = vadd.f32 %v676, %v677
      %v679 = vsel %vm606, %v656, 0.0
      %v680 = vadd.f32 %v678, %v679
      %v681 = vsel %vm606, %v657, 0.0
      %v682 = vadd.f32 %v680, %v681
      %v683 = vsel %vm606, %v658, 0.0
      %v684 = vadd.f32 %v682, %v683
      %v685 = vsel %vm606, %v659, 0.0
      %v686 = vadd.f32 %v684, %v685
      %v687 = vsel %vm606, %v660, 0.0
      %v688 = vadd.f32 %v686, %v687
      %v689 = vsel %vm606, %v661, 0.0
      %v690 = vadd.f32 %v688, %v689
      %v691 = vsel %vm606, %v662, 0.0
      %v692 = vadd.f32 %v690, %v691
      %v693 = vsel %vm606, %v663, 0.0
      %v694 = vadd.f32 %v692, %v693
      %v695 = vrot.slane %v694, 4
      %v696 = vadd.f32 %v694, %v695
      %v697 = vrot.slane %v696, 2
      %v698 = vadd.f32 %v696, %v697
      %v699 = vrot.slane %v698, 1
      %v700 = vadd.f32 %v698, %v699
      %v701 = vadd.f32 %v647, %v700
      %702 = vst.msk [vmem:[#allocation4] sm:$0x1] %vm645, %v701
      %p703 = scmp.lt.s32.totalorder %s18, 1
      // Predicated region
      $region53: #{multi_filter_layer.1} parent=47 // pred_check
        %p704 = pneg %p703
      $region54: #{multi_filter_layer.1} parent=47 // pred_check_branch
        %706 = sbr.rel (%p704) target = $region56
      $region55: #{multi_filter_layer.1} parent=47 // pred_region
        %s707 = smul.u32 %s18, 128
        %s708 = scalar_lea.vmem [#allocation2], %s707
        %709 = vst.msk [vmem:[%s708] sm:$0xff] %vm606, %v543
        %710 = vst.msk [vmem:[%s708 + $0x8] sm:$0xff] %vm606, %v546
        %711 = vst.msk [vmem:[%s708 + $0x10] sm:$0xff] %vm606, %v551
        %712 = vst.msk [vmem:[%s708 + $0x18] sm:$0xff] %vm606, %v554
        %713 = vst.msk [vmem:[%s708 + $0x20] sm:$0xff] %vm606, %v559
        %714 = vst.msk [vmem:[%s708 + $0x28] sm:$0xff] %vm606, %v562
        %715 = vst.msk [vmem:[%s708 + $0x30] sm:$0xff] %vm606, %v567
        %716 = vst.msk [vmem:[%s708 + $0x38] sm:$0xff] %vm606, %v570
        %717 = vst.msk [vmem:[%s708 + $0x40] sm:$0xff] %vm606, %v575
        %718 = vst.msk [vmem:[%s708 + $0x48] sm:$0xff] %vm606, %v578
        %719 = vst.msk [vmem:[%s708 + $0x50] sm:$0xff] %vm606, %v583
        %720 = vst.msk [vmem:[%s708 + $0x58] sm:$0xff] %vm606, %v586
        %721 = vst.msk [vmem:[%s708 + $0x60] sm:$0xff] %vm606, %v591
        %722 = vst.msk [vmem:[%s708 + $0x68] sm:$0xff] %vm606, %v594
        %723 = vst.msk [vmem:[%s708 + $0x70] sm:$0xff] %vm606, %v599
        %724 = vst.msk [vmem:[%s708 + $0x78] sm:$0xff] %vm606, %v602
      $region56: #{multi_filter_layer.1} parent=47 // pred_fallthru
        _
      %p725 = scmp.eq.s32.totalorder %s18, 3
      // Predicated region
      $region57: #{multi_filter_layer.1} parent=47 // pred_check
        %p726 = pneg %p725
      $region58: #{multi_filter_layer.1} parent=47 // pred_check_branch
        %728 = sbr.rel (%p726) target = $region60
      $region59: #{multi_filter_layer.1} parent=47 // pred_region
        %v729 = vld [vmem:[#allocation3] sm:$0x1]
        %v730 = vrcp.pop 512.0
        %v731 = vmul.f32 %v729, %v730
        %v732 = vld [vmem:[#allocation4] sm:$0x1]
        %v733 = vmul.f32 %v732, %v730
        %v734 = vmul.f32 %v731, %v731
        %v735 = vsub.f32 %v733, %v734
        %v736 = vld [vmem:[%s3] sm:$0x1]
        %v737 = vadd.f32 %v735, 1e-05
        %v738 = vrsqrt.pop %v737
        %v739 = vmul.f32 %v736, %v738
        %v740 = vld [vmem:[%s4] sm:$0x1]
        %v741 = vmul.f32 %v731, %v739
        %v742 = vsub.f32 %v740, %v741
        %v743 = vld [vmem:[#allocation2] sm:$0xff]
        %v744 = vld [vmem:[#allocation2 + $0x8] sm:$0xff]
        %v745 = vld [vmem:[#allocation2 + $0x10] sm:$0xff]
        %v746 = vld [vmem:[#allocation2 + $0x18] sm:$0xff]
        %v747 = vld [vmem:[#allocation2 + $0x20] sm:$0xff]
        %v748 = vld [vmem:[#allocation2 + $0x28] sm:$0xff]
        %v749 = vld [vmem:[#allocation2 + $0x30] sm:$0xff]
        %v750 = vld [vmem:[#allocation2 + $0x38] sm:$0xff]
        %v751 = vld [vmem:[#allocation2 + $0x40] sm:$0xff]
        %v752 = vld [vmem:[#allocation2 + $0x48] sm:$0xff]
        %v753 = vld [vmem:[#allocation2 + $0x50] sm:$0xff]
        %v754 = vld [vmem:[#allocation2 + $0x58] sm:$0xff]
        %v755 = vld [vmem:[#allocation2 + $0x60] sm:$0xff]
        %v756 = vld [vmem:[#allocation2 + $0x68] sm:$0xff]
        %v757 = vld [vmem:[#allocation2 + $0x70] sm:$0xff]
        %v758 = vld [vmem:[#allocation2 + $0x78] sm:$0xff]
        %v760 = vlaneseq
        %v761 = vshrl.u32 %v760, 7
        %v762 = vsub.s32 0, %v761
        %v763 = vrot.slane %v739, %v762
        %v765 = vmul.f32 %v743, %v763
        %v766 = vmul.f32 %v744, %v763
        %v767 = vmul.f32 %v745, %v763
        %v768 = vmul.f32 %v746, %v763
        %v769 = vmul.f32 %v747, %v763
        %v770 = vmul.f32 %v748, %v763
        %v771 = vmul.f32 %v749, %v763
        %v772 = vmul.f32 %v750, %v763
        %v773 = vmul.f32 %v751, %v763
        %v774 = vmul.f32 %v752, %v763
        %v775 = vmul.f32 %v753, %v763
        %v776 = vmul.f32 %v754, %v763
        %v777 = vmul.f32 %v755, %v763
        %v778 = vmul.f32 %v756, %v763
        %v779 = vmul.f32 %v757, %v763
        %v780 = vmul.f32 %v758, %v763
        %v782 = vlaneseq
        %v783 = vshrl.u32 %v782, 7
        %v784 = vsub.s32 0, %v783
        %v785 = vrot.slane %v742, %v784
        %v787 = vadd.f32 %v765, %v785
        %v788 = vadd.f32 %v766, %v785
        %v789 = vadd.f32 %v767, %v785
        %v790 = vadd.f32 %v768, %v785
        %v791 = vadd.f32 %v769, %v785
        %v792 = vadd.f32 %v770, %v785
        %v793 = vadd.f32 %v771, %v785
        %v794 = vadd.f32 %v772, %v785
        %v795 = vadd.f32 %v773, %v785
        %v796 = vadd.f32 %v774, %v785
        %v797 = vadd.f32 %v775, %v785
        %v798 = vadd.f32 %v776, %v785
        %v799 = vadd.f32 %v777, %v785
        %v800 = vadd.f32 %v778, %v785
        %v801 = vadd.f32 %v779, %v785
        %v802 = vadd.f32 %v780, %v785
        %v803 = vmax.f32 %v787, 0.0
        %v804 = vmax.f32 %v788, 0.0
        %v805 = vmax.f32 %v789, 0.0
        %v806 = vmax.f32 %v790, 0.0
        %v807 = vmax.f32 %v791, 0.0
        %v808 = vmax.f32 %v792, 0.0
        %v809 = vmax.f32 %v793, 0.0
        %v810 = vmax.f32 %v794, 0.0
        %v811 = vmax.f32 %v795, 0.0
        %v812 = vmax.f32 %v796, 0.0
        %v813 = vmax.f32 %v797, 0.0
        %v814 = vmax.f32 %v798, 0.0
        %v815 = vmax.f32 %v799, 0.0
        %v816 = vmax.f32 %v800, 0.0
        %v817 = vmax.f32 %v801, 0.0
        %v818 = vmax.f32 %v802, 0.0
        %v819 = vpack.c.bf16 %v804, %v803
        %v820 = vpack.c.bf16 %v806, %v805
        %v821 = vpack.c.bf16 %v808, %v807
        %v822 = vpack.c.bf16 %v810, %v809
        %v823 = vpack.c.bf16 %v812, %v811
        %v824 = vpack.c.bf16 %v814, %v813
        %v825 = vpack.c.bf16 %v816, %v815
        %v826 = vpack.c.bf16 %v818, %v817
        %v827 = vld [vmem:[%s5] sm:$0xf]
        %v828 = vld [vmem:[%s5 + $0x4] sm:$0x3]
        %v829 = vld [vmem:[%s6] sm:$0x1]
        %v831 = vlaneseq
        %v832 = vshrl.u32 %v831, 7
        %v833 = vsub.s32 0, %v832
        %v834 = vrot.slane %v829, %v833
        %v838 = vunpack.c.l.b16 %v827
        %v839 = vunpack.c.l.b16 %v828
        %v840 = vpack.c.b16 %v839, %v838
        %v842 = vsel %vm606, %v819, 0
        %v845 = vsel %vm606, %v820, 0
        %v848 = vsel %vm606, %v821, 0
        %v851 = vsel %vm606, %v822, 0
        %v854 = vsel %vm606, %v823, 0
        %v857 = vsel %vm606, %v824, 0
        %v860 = vsel %vm606, %v825, 0
        %v863 = vsel %vm606, %v826, 0
        %vm865 = vcmask 1045504
        %v867 = vsel %vm865, %v840, 0
        %869 = vmatprep.subr.bf16.mxu0 0
        %870 = vmatpush1.bf16.msra.mxu0 %v867
        %871 = vmatprep.subr.bf16.mxu0 0
        %872 = vmatpush1.bf16.msra.mxu0 0
        %873 = vmatprep.subr.bf16.mxu0 0
        %874 = vmatpush1.bf16.msra.mxu0 0
        %875 = vmatprep.subr.bf16.mxu0 0
        %876 = vmatpush1.bf16.msra.mxu0 0
        %877 = vmatprep.subr.bf16.mxu0 0
        %878 = vmatpush1.bf16.msra.mxu0 0
        %879 = vmatprep.subr.bf16.mxu0 0
        %880 = vmatpush1.bf16.msra.mxu0 0
        %881 = vmatprep.subr.bf16.mxu0 0
        %882 = vmatpush1.bf16.msra.mxu0 0
        %883 = vmatprep.subr.bf16.mxu0 0
        %884 = vmatpush1.bf16.msra.mxu0 0
        %885 = vmatprep.subr.bf16.mxu0 0
        %886 = vmatpush1.bf16.msra.mxu0 0
        %887 = vmatprep.subr.bf16.mxu0 0
        %888 = vmatpush1.bf16.msra.mxu0 0
        %889 = vmatprep.subr.bf16.mxu0 0
        %890 = vmatpush1.bf16.msra.mxu0 0
        %891 = vmatprep.subr.bf16.mxu0 0
        %892 = vmatpush1.bf16.msra.mxu0 0
        %893 = vmatprep.subr.bf16.mxu0 0
        %894 = vmatpush1.bf16.msra.mxu0 0
        %895 = vmatprep.subr.bf16.mxu0 0
        %896 = vmatpush1.bf16.msra.mxu0 0
        %897 = vmatprep.subr.bf16.mxu0 0
        %898 = vmatpush1.bf16.msra.mxu0 0
        %899 = vmatprep.subr.bf16.mxu0 0
        %900 = vmatpush1.bf16.msra.mxu0 0
        %901 = vmatprep.mubr.bf16.mxu0 0
        %902 = vmatmul.mubr.bf16.gmra.mrb[0].mxu0 %v842
        %v903 = vpop.f32.mrb[0].mxu0
        %v904 = vadd.f32 %v834, %v903
        %v905 = vpop.f32.mrb[0].mxu0
        %v906 = vpop.f32.mrb[0].mxu0
        %v907 = vadd.f32 %v834, %v906
        %v908 = vpop.f32.mrb[0].mxu0
        %909 = vmatprep.mubr.bf16.mxu0 0
        %910 = vmatmul.mubr.bf16.gmra.mrb[0].mxu0 %v845
        %v911 = vpop.f32.mrb[0].mxu0
        %v912 = vadd.f32 %v834, %v911
        %v913 = vpop.f32.mrb[0].mxu0
        %v914 = vpop.f32.mrb[0].mxu0
        %v915 = vadd.f32 %v834, %v914
        %v916 = vpop.f32.mrb[0].mxu0
        %917 = vmatprep.mubr.bf16.mxu0 0
        %918 = vmatmul.mubr.bf16.gmra.mrb[0].mxu0 %v848
        %v919 = vpop.f32.mrb[0].mxu0
        %v920 = vadd.f32 %v834, %v919
        %v921 = vpop.f32.mrb[0].mxu0
        %v922 = vpop.f32.mrb[0].mxu0
        %v923 = vadd.f32 %v834, %v922
        %v924 = vpop.f32.mrb[0].mxu0
        %925 = vmatprep.mubr.bf16.mxu0 0
        %926 = vmatmul.mubr.bf16.gmra.mrb[0].mxu0 %v851
        %v927 = vpop.f32.mrb[0].mxu0
        %v928 = vadd.f32 %v834, %v927
        %v929 = vpop.f32.mrb[0].mxu0
        %v930 = vpop.f32.mrb[0].mxu0
        %v931 = vadd.f32 %v834, %v930
        %v932 = vpop.f32.mrb[0].mxu0
        %933 = vmatprep.mubr.bf16.mxu0 0
        %934 = vmatmul.mubr.bf16.gmra.mrb[0].mxu0 %v854
        %v935 = vpop.f32.mrb[0].mxu0
        %v936 = vadd.f32 %v834, %v935
        %v937 = vpop.f32.mrb[0].mxu0
        %v938 = vpop.f32.mrb[0].mxu0
        %v939 = vadd.f32 %v834, %v938
        %v940 = vpop.f32.mrb[0].mxu0
        %941 = vmatprep.mubr.bf16.mxu0 0
        %942 = vmatmul.mubr.bf16.gmra.mrb[0].mxu0 %v857
        %v943 = vpop.f32.mrb[0].mxu0
        %v944 = vadd.f32 %v834, %v943
        %v945 = vpop.f32.mrb[0].mxu0
        %v946 = vpop.f32.mrb[0].mxu0
        %v947 = vadd.f32 %v834, %v946
        %v948 = vpop.f32.mrb[0].mxu0
        %949 = vmatprep.mubr.bf16.mxu0 0
        %950 = vmatmul.mubr.bf16.gmra.mrb[0].mxu0 %v860
        %v951 = vpop.f32.mrb[0].mxu0
        %v952 = vadd.f32 %v834, %v951
        %v953 = vpop.f32.mrb[0].mxu0
        %v954 = vpop.f32.mrb[0].mxu0
        %v955 = vadd.f32 %v834, %v954
        %v956 = vpop.f32.mrb[0].mxu0
        %957 = vmatprep.mubr.bf16.mxu0 0
        %958 = vmatmul.mubr.bf16.gmra.mrb[0].mxu0 %v863
        %v959 = vpop.f32.mrb[0].mxu0
        %v960 = vadd.f32 %v834, %v959
        %v961 = vpop.f32.mrb[0].mxu0
        %v962 = vpop.f32.mrb[0].mxu0
        %v963 = vadd.f32 %v834, %v962
        %v964 = vpop.f32.mrb[0].mxu0
        %965 = vdwg.mxu0
        %vm966 = vcmask 64512
        %967 = vst.msk [vmem:[%s7] sm:$0xff] %vm966, %v904
        %968 = vst.msk [vmem:[%s7 + $0x8] sm:$0xff] %vm966, %v907
        %969 = vst.msk [vmem:[%s7 + $0x10] sm:$0xff] %vm966, %v912
        %970 = vst.msk [vmem:[%s7 + $0x18] sm:$0xff] %vm966, %v915
        %971 = vst.msk [vmem:[%s7 + $0x20] sm:$0xff] %vm966, %v920
        %972 = vst.msk [vmem:[%s7 + $0x28] sm:$0xff] %vm966, %v923
        %973 = vst.msk [vmem:[%s7 + $0x30] sm:$0xff] %vm966, %v928
        %974 = vst.msk [vmem:[%s7 + $0x38] sm:$0xff] %vm966, %v931
        %975 = vst.msk [vmem:[%s7 + $0x40] sm:$0xff] %vm966, %v936
        %976 = vst.msk [vmem:[%s7 + $0x48] sm:$0xff] %vm966, %v939
        %977 = vst.msk [vmem:[%s7 + $0x50] sm:$0xff] %vm966, %v944
        %978 = vst.msk [vmem:[%s7 + $0x58] sm:$0xff] %vm966, %v947
        %979 = vst.msk [vmem:[%s7 + $0x60] sm:$0xff] %vm966, %v952
        %980 = vst.msk [vmem:[%s7 + $0x68] sm:$0xff] %vm966, %v955
        %981 = vst.msk [vmem:[%s7 + $0x70] sm:$0xff] %vm966, %v960
        %982 = vst.msk [vmem:[%s7 + $0x78] sm:$0xff] %vm966, %v963
      $region60: #{multi_filter_layer.1} parent=47 // pred_fallthru
        _
      // Predicated region
      $region61: #{multi_filter_layer.1} parent=47 // pred_check
        %p983 = pneg %p183
      $region62: #{multi_filter_layer.1} parent=47 // pred_check_branch
        %985 = sbr.rel (%p983) target = $region64
      $region63: #{multi_filter_layer.1} parent=47 // pred_region
        _
      $region64: #{multi_filter_layer.1} parent=47 // pred_fallthru
        _
      // Predicated region
      $region65: #{multi_filter_layer.1} parent=47 // pred_check
        %p986 = pneg %p183
      $region66: #{multi_filter_layer.1} parent=47 // pred_check_branch
        %988 = sbr.rel (%p986) target = $region68
      $region67: #{multi_filter_layer.1} parent=47 // pred_region
        _
      $region68: #{multi_filter_layer.1} parent=47 // pred_fallthru
        _
    $region48: #{multi_filter_layer.1} parent=5 // pred_fallthru
      _
    %p989 = scmp.le.s32.totalorder 2, %s13
    // Predicated region
    $region69: #{multi_filter_layer.1} parent=5 // pred_check
      %p990 = pneg %p989
    $region70: #{multi_filter_layer.1} parent=5 // pred_check_branch
      %992 = sbr.rel (%p990) target = $region72
    $region71: #{multi_filter_layer.1} parent=5 // pred_region
      %s993 = ssub.s32 %s13, 2
    $region72: #{multi_filter_layer.1} parent=5 // pred_fallthru
      _
  $region6: #{multi_filter_layer.1} parent=0 // loop_footer
    %s17 = sadd.s32 1, %s13
  $region7: #{multi_filter_layer.1} parent=0 // loop_footer_branch
    %12 = sbr.rel target = $region3
  $region8: #{multi_filter_layer.1} parent=0 // loop_exit
    _

</llo_original>
